<compile_context>
chip_gen: v7x
topology: tpu7x:2x2x1
jax: 0.10.0
libtpu: 0.0.40
codegen_flags: <defaults>
</compile_context>

<pallas_src>
import functools

import jax
import jax.numpy as jnp
from jax.experimental import pallas as pl
from jax.experimental.pallas import tpu as pltpu

BN_EPS = 1e-5
LANE = 128
SUBLANE = 8


def _round_up(v, m):
    return ((v + m - 1) // m) * m


def _fused_mlp_kernel(*refs, num_layers):
    """refs = (x, w_0, gamma_0, beta_0, ..., w_{L-1}, gamma_{L-1}, beta_{L-1}, out).

    Each layer: z = h @ W   (bias omitted: cancelled by training-mode BN centering)
                BatchNorm1d training mode (batch mean, biased variance, eps in rsqrt)
                ReLU on all but the last layer (module drops the trailing ReLU).
    One grid step = one full independent batch, so BN statistics stay exact.
    """
    x_ref = refs[0]
    o_ref = refs[-1]
    p = refs[1:-1]

    h = x_ref[...].astype(jnp.float32)
    inv_n = 1.0 / h.shape[0]

    for i in range(num_layers):
        w = p[3 * i][...]          # bf16, (k, f_out_pad)
        gamma = p[3 * i + 1][...]  # f32,  (1, f_out_pad)
        beta = p[3 * i + 2][...]   # f32,  (1, f_out_pad)

        # Only the real (rounded-to-8) contraction width is kept in W; slice the
        # activation to match.  Padded activation lanes are exactly 0 (gamma=beta=0
        # in padded columns), so this is bit-equivalent to the padded-K version.
        k = w.shape[0]
        lhs = h if h.shape[1] == k else h[:, :k]

        # Linear on the MXU: bf16 operands, f32 accumulation.
        z = jnp.dot(lhs.astype(jnp.bfloat16), w, preferred_element_type=jnp.float32)

        # BatchNorm1d, training-mode statistics over the full batch (f32, two-pass
        # centered variance to avoid E[z^2]-mean^2 cancellation).
        mean = jnp.sum(z, axis=0, keepdims=True) * inv_n
        centered = z - mean
        var = jnp.sum(centered * centered, axis=0, keepdims=True) * inv_n
        scale = gamma * jax.lax.rsqrt(var + BN_EPS)   # fold gamma*inv_std, rsqrt on EUP
        h = centered * scale + beta                   # padded cols: gamma=beta=0 -> 0

        if i < num_layers - 1:                        # last block has no ReLU
            h = jnp.maximum(h, 0.0)

    o_ref[...] = h.astype(o_ref.dtype)


def init_mlp_params(key, sizes):
    """PyTorch-like Linear weight init U(-1/sqrt(fan_in), 1/sqrt(fan_in)); BN gamma=1,
    beta=0.  Weights are bf16, with:
      * contraction dim = real in_features for layer 0 (no input padding needed),
        in_features rounded up to 8 for inner layers,
      * out_features padded to a multiple of 128 (lane-dense stores).
    Padded weight rows/cols and padded gamma/beta columns are exactly 0, so padded
    output columns are exactly 0 and never contaminate real columns."""
    params = []
    for s in range(len(sizes) - 1):
        f_in, f_out = sizes[s], sizes[s + 1]
        k = f_in if s == 0 else _round_up(f_in, SUBLANE)
        f_out_p = _round_up(f_out, LANE)
        key, kw = jax.random.split(key)
        bound = 1.0 / (f_in ** 0.5)
        w_real = jax.random.uniform(kw, (f_in, f_out), jnp.float32, -bound, bound)
        w = (jnp.zeros((k, f_out_p), jnp.float32)
             .at[:f_in, :f_out].set(w_real)
             .astype(jnp.bfloat16))
        gamma = jnp.zeros((1, f_out_p), jnp.float32).at[:, :f_out].set(1.0)
        beta = jnp.zeros((1, f_out_p), jnp.float32)
        params.append((w, gamma, beta))
    return params


def mlp_forward(x, params, sizes):
    """Single fused pallas_call for the whole MLP.

    x: (n, sizes[0]) for one batch, or (B, n, sizes[0]) for B independent batches.
    Returns (n, sizes[-1]) or (B, n, sizes[-1]).  For the stacked case the grid runs
    over B with weights DMA'd once (constant index_map) and kept VMEM-resident;
    BN stays exact because each grid step processes one full batch."""
    squeeze = x.ndim == 2
    if squeeze:
        x = x[None]
    n_batches, n, f_in = x.shape
    assert f_in == sizes[0]
    num_layers = len(params)
    f_out_pad = params[-1][0].shape[1]

    in_specs = [pl.BlockSpec((None, n, f_in), lambda b: (b, 0, 0))]
    flat_inputs = [x]
    for (w, gamma, beta) in params:
        in_specs += [
            pl.BlockSpec(w.shape, lambda b: (0, 0)),       # weights resident across grid
            pl.BlockSpec(gamma.shape, lambda b: (0, 0)),
            pl.BlockSpec(beta.shape, lambda b: (0, 0)),
        ]
        flat_inputs += [w, gamma, beta]

    kernel = functools.partial(_fused_mlp_kernel, num_layers=num_layers)

    out_pad = pl.pallas_call(
        kernel,
        out_shape=jax.ShapeDtypeStruct((n_batches, n, f_out_pad), jnp.float32),
        grid=(n_batches,),
        in_specs=in_specs,
        out_specs=pl.BlockSpec((None, n, f_out_pad), lambda b: (b, 0, 0)),
        compiler_params=pltpu.CompilerParams(
            dimension_semantics=("parallel",)),            # shards over v7x's 2 TCs
    )(*flat_inputs)

    # TODO(synk): for large batch / hidden dims, add feature-dim (N) tiling (keeps
    # full-batch BN stats exact) with tile sizes derived from pltpu.get_tpu_info().
    out = out_pad[..., : sizes[-1]]
    return out[0] if squeeze else out


def _mlp_ref(x, params, sizes):
    """Pure-JAX reference using the same bf16 weights (for correctness check)."""
    h = x
    num_layers = len(params)
    for i, (w_pad, g_pad, b_pad) in enumerate(params):
        f_in, f_out = sizes[i], sizes[i + 1]
        w = w_pad[:f_in, :f_out]
        g = g_pad[:, :f_out]
        b = b_pad[:, :f_out]
        z = jnp.dot(h.astype(jnp.bfloat16), w, preferred_element_type=jnp.float32)
        mean = jnp.mean(z, axis=0, keepdims=True)
        var = jnp.mean((z - mean) ** 2, axis=0, keepdims=True)
        h = (z - mean) * (g * jax.lax.rsqrt(var + BN_EPS)) + b
        if i < num_layers - 1:
            h = jnp.maximum(h, 0.0)
    return h


if __name__ == "__main__":
    # Small shapes consistent with the module: batch=8, sizes=[16, 32, 8]
    sizes = [16, 32, 8]
    batch = 8

    key = jax.random.PRNGKey(0)
    key, kx, kxs = jax.random.split(key, 3)
    params = init_mlp_params(key, sizes)

    # Single batch, shape (8, 16).
    x = jax.random.normal(kx, (batch, sizes[0]), jnp.float32)
    out = mlp_forward(x, params, sizes)
    jax.block_until_ready(out)
    assert out.shape == (batch, sizes[-1])
    assert bool(jnp.all(jnp.isfinite(out)))
    ref = _mlp_ref(x, params, sizes)
    assert jnp.allclose(out, ref, rtol=1e-3, atol=1e-3)

    # Many independent batches amortized in one pallas_call (grid over leading axis).
    n_calls = 4
    xs = jax.random.normal(kxs, (n_calls, batch, sizes[0]), jnp.float32)
    outs = mlp_forward(xs, params, sizes)
    jax.block_until_ready(outs)
    assert outs.shape == (n_calls, batch, sizes[-1])
    refs = jnp.stack([_mlp_ref(xs[b], params, sizes) for b in range(n_calls)])
    assert jnp.allclose(outs, refs, rtol=1e-3, atol=1e-3)

    print("KERNEL_OK")
</pallas_src>

<mosaic_0001>
module attributes {stable_mosaic.version = 11 : i64} {
  func.func @_fused_mlp_kernel(%arg0: i32, %arg1: memref<1x8x16xf32, #tpu.memory_space<vmem>>, %arg2: memref<16x128xbf16, #tpu.memory_space<vmem>>, %arg3: memref<1x128xf32, #tpu.memory_space<vmem>>, %arg4: memref<1x128xf32, #tpu.memory_space<vmem>>, %arg5: memref<32x128xbf16, #tpu.memory_space<vmem>>, %arg6: memref<1x128xf32, #tpu.memory_space<vmem>>, %arg7: memref<1x128xf32, #tpu.memory_space<vmem>>, %arg8: memref<1x8x128xf32, #tpu.memory_space<vmem>>) attributes {dimension_semantics = [#tpu.dimension_semantics<parallel>], iteration_bounds = array<i64: 1>, scalar_prefetch = 0 : i64, scratch_operands = 0 : i64, tpu.core_type = #tpu.core_type<tc>, window_params = [{transform_indices = @transform_0, window_bounds = array<i64: 1, 8, 16>}, {pipeline_mode = #tpu.pipeline_mode<synchronous>, transform_indices = @transform_1, window_bounds = array<i64: 16, 128>}, {pipeline_mode = #tpu.pipeline_mode<synchronous>, transform_indices = @transform_2, window_bounds = array<i64: 1, 128>}, {pipeline_mode = #tpu.pipeline_mode<synchronous>, transform_indices = @transform_3, window_bounds = array<i64: 1, 128>}, {pipeline_mode = #tpu.pipeline_mode<synchronous>, transform_indices = @transform_4, window_bounds = array<i64: 32, 128>}, {pipeline_mode = #tpu.pipeline_mode<synchronous>, transform_indices = @transform_5, window_bounds = array<i64: 1, 128>}, {pipeline_mode = #tpu.pipeline_mode<synchronous>, transform_indices = @transform_6, window_bounds = array<i64: 1, 128>}, {transform_indices = @transform_7, window_bounds = array<i64: 1, 8, 128>}]} {
    %c0 = arith.constant 0 : index
    %c0_0 = arith.constant 0 : index
    %c0_1 = arith.constant 0 : index
    %0 = vector.load %arg1[%c0, %c0_0, %c0_1] : memref<1x8x16xf32, #tpu.memory_space<vmem>>, vector<1x8x16xf32>
    %1 = vector.shape_cast %0 : vector<1x8x16xf32> to vector<8x16xf32>
    %c0_2 = arith.constant 0 : index
    %c0_3 = arith.constant 0 : index
    %2 = vector.load %arg2[%c0_2, %c0_3] : memref<16x128xbf16, #tpu.memory_space<vmem>>, vector<16x128xbf16>
    %c0_4 = arith.constant 0 : index
    %c0_5 = arith.constant 0 : index
    %3 = vector.load %arg3[%c0_4, %c0_5] : memref<1x128xf32, #tpu.memory_space<vmem>>, vector<1x128xf32>
    %c0_6 = arith.constant 0 : index
    %c0_7 = arith.constant 0 : index
    %4 = vector.load %arg4[%c0_6, %c0_7] : memref<1x128xf32, #tpu.memory_space<vmem>>, vector<1x128xf32>
    %5 = arith.truncf %1 : vector<8x16xf32> to vector<8x16xbf16>
    %cst = arith.constant dense<0.000000e+00> : vector<8x128xf32>
    %6 = tpu.matmul %5, %2, %cst {dimension_numbers = #tpu.dot_dimension_numbers<[1], [0], [0], [1], [0, 0, 1, 1], [], []>} : vector<8x16xbf16>, vector<16x128xbf16>, vector<8x128xf32> -> vector<8x128xf32>
    %cst_8 = arith.constant dense<0.000000e+00> : vector<128xf32>
    %7 = vector.multi_reduction <add>, %6, %cst_8 [0] : vector<8x128xf32> to vector<128xf32>
    %8 = vector.shape_cast %7 : vector<128xf32> to vector<1x128xf32>
    %cst_9 = arith.constant 1.250000e-01 : f32
    %9 = vector.broadcast %cst_9 : f32 to vector<1x128xf32>
    %10 = arith.mulf %8, %9 : vector<1x128xf32>
    %11 = vector.broadcast %10 : vector<1x128xf32> to vector<8x128xf32>
    %12 = arith.subf %6, %11 : vector<8x128xf32>
    %13 = arith.mulf %12, %12 : vector<8x128xf32>
    %cst_10 = arith.constant dense<0.000000e+00> : vector<128xf32>
    %14 = vector.multi_reduction <add>, %13, %cst_10 [0] : vector<8x128xf32> to vector<128xf32>
    %15 = vector.shape_cast %14 : vector<128xf32> to vector<1x128xf32>
    %cst_11 = arith.constant 1.250000e-01 : f32
    %16 = vector.broadcast %cst_11 : f32 to vector<1x128xf32>
    %17 = arith.mulf %15, %16 : vector<1x128xf32>
    %cst_12 = arith.constant 9.99999974E-6 : f32
    %18 = vector.broadcast %cst_12 : f32 to vector<1x128xf32>
    %19 = arith.addf %17, %18 : vector<1x128xf32>
    %20 = math.rsqrt %19 : vector<1x128xf32>
    %21 = arith.mulf %3, %20 : vector<1x128xf32>
    %22 = vector.broadcast %21 : vector<1x128xf32> to vector<8x128xf32>
    %23 = arith.mulf %12, %22 : vector<8x128xf32>
    %24 = vector.broadcast %4 : vector<1x128xf32> to vector<8x128xf32>
    %25 = arith.addf %23, %24 : vector<8x128xf32>
    %cst_13 = arith.constant 0.000000e+00 : f32
    %26 = vector.broadcast %cst_13 : f32 to vector<8x128xf32>
    %27 = arith.maximumf %25, %26 : vector<8x128xf32>
    %c0_14 = arith.constant 0 : index
    %c0_15 = arith.constant 0 : index
    %28 = vector.load %arg5[%c0_14, %c0_15] : memref<32x128xbf16, #tpu.memory_space<vmem>>, vector<32x128xbf16>
    %c0_16 = arith.constant 0 : index
    %c0_17 = arith.constant 0 : index
    %29 = vector.load %arg6[%c0_16, %c0_17] : memref<1x128xf32, #tpu.memory_space<vmem>>, vector<1x128xf32>
    %c0_18 = arith.constant 0 : index
    %c0_19 = arith.constant 0 : index
    %30 = vector.load %arg7[%c0_18, %c0_19] : memref<1x128xf32, #tpu.memory_space<vmem>>, vector<1x128xf32>
    %31 = vector.extract_strided_slice %27 {offsets = [0, 0], sizes = [8, 32], strides = [1, 1]} : vector<8x128xf32> to vector<8x32xf32>
    %32 = arith.truncf %31 : vector<8x32xf32> to vector<8x32xbf16>
    %cst_20 = arith.constant dense<0.000000e+00> : vector<8x128xf32>
    %33 = tpu.matmul %32, %28, %cst_20 {dimension_numbers = #tpu.dot_dimension_numbers<[1], [0], [0], [1], [0, 0, 1, 1], [], []>} : vector<8x32xbf16>, vector<32x128xbf16>, vector<8x128xf32> -> vector<8x128xf32>
    %cst_21 = arith.constant dense<0.000000e+00> : vector<128xf32>
    %34 = vector.multi_reduction <add>, %33, %cst_21 [0] : vector<8x128xf32> to vector<128xf32>
    %35 = vector.shape_cast %34 : vector<128xf32> to vector<1x128xf32>
    %cst_22 = arith.constant 1.250000e-01 : f32
    %36 = vector.broadcast %cst_22 : f32 to vector<1x128xf32>
    %37 = arith.mulf %35, %36 : vector<1x128xf32>
    %38 = vector.broadcast %37 : vector<1x128xf32> to vector<8x128xf32>
    %39 = arith.subf %33, %38 : vector<8x128xf32>
    %40 = arith.mulf %39, %39 : vector<8x128xf32>
    %cst_23 = arith.constant dense<0.000000e+00> : vector<128xf32>
    %41 = vector.multi_reduction <add>, %40, %cst_23 [0] : vector<8x128xf32> to vector<128xf32>
    %42 = vector.shape_cast %41 : vector<128xf32> to vector<1x128xf32>
    %cst_24 = arith.constant 1.250000e-01 : f32
    %43 = vector.broadcast %cst_24 : f32 to vector<1x128xf32>
    %44 = arith.mulf %42, %43 : vector<1x128xf32>
    %cst_25 = arith.constant 9.99999974E-6 : f32
    %45 = vector.broadcast %cst_25 : f32 to vector<1x128xf32>
    %46 = arith.addf %44, %45 : vector<1x128xf32>
    %47 = math.rsqrt %46 : vector<1x128xf32>
    %48 = arith.mulf %29, %47 : vector<1x128xf32>
    %49 = vector.broadcast %48 : vector<1x128xf32> to vector<8x128xf32>
    %50 = arith.mulf %39, %49 : vector<8x128xf32>
    %51 = vector.broadcast %30 : vector<1x128xf32> to vector<8x128xf32>
    %52 = arith.addf %50, %51 : vector<8x128xf32>
    %c0_26 = arith.constant 0 : index
    %c0_27 = arith.constant 0 : index
    %c0_28 = arith.constant 0 : index
    %53 = vector.load %arg8[%c0_26, %c0_27, %c0_28] : memref<1x8x128xf32, #tpu.memory_space<vmem>>, vector<1x8x128xf32>
    %54 = vector.shape_cast %53 : vector<1x8x128xf32> to vector<8x128xf32>
    %55 = vector.shape_cast %52 : vector<8x128xf32> to vector<1x8x128xf32>
    tpu.vector_store %arg8[%c0_26, %c0_27, %c0_28], %55 {strides = array<i32>} : memref<1x8x128xf32, #tpu.memory_space<vmem>>, vector<1x8x128xf32>,
    return
  }
  func.func @transform_0(%arg0: i32) -> (i32, i32, i32) {
    %c0_i32 = arith.constant 0 : i32
    %c0_i32_0 = arith.constant 0 : i32
    %c0_i32_1 = arith.constant 0 : i32
    return %arg0, %c0_i32, %c0_i32_0 : i32, i32, i32
  }
  func.func @transform_1(%arg0: i32) -> (i32, i32) {
    %c0_i32 = arith.constant 0 : i32
    %c0_i32_0 = arith.constant 0 : i32
    %c0_i32_1 = arith.constant 0 : i32
    return %c0_i32, %c0_i32_0 : i32, i32
  }
  func.func @transform_2(%arg0: i32) -> (i32, i32) {
    %c0_i32 = arith.constant 0 : i32
    %c0_i32_0 = arith.constant 0 : i32
    %c0_i32_1 = arith.constant 0 : i32
    return %c0_i32, %c0_i32_0 : i32, i32
  }
  func.func @transform_3(%arg0: i32) -> (i32, i32) {
    %c0_i32 = arith.constant 0 : i32
    %c0_i32_0 = arith.constant 0 : i32
    %c0_i32_1 = arith.constant 0 : i32
    return %c0_i32, %c0_i32_0 : i32, i32
  }
  func.func @transform_4(%arg0: i32) -> (i32, i32) {
    %c0_i32 = arith.constant 0 : i32
    %c0_i32_0 = arith.constant 0 : i32
    %c0_i32_1 = arith.constant 0 : i32
    return %c0_i32, %c0_i32_0 : i32, i32
  }
  func.func @transform_5(%arg0: i32) -> (i32, i32) {
    %c0_i32 = arith.constant 0 : i32
    %c0_i32_0 = arith.constant 0 : i32
    %c0_i32_1 = arith.constant 0 : i32
    return %c0_i32, %c0_i32_0 : i32, i32
  }
  func.func @transform_6(%arg0: i32) -> (i32, i32) {
    %c0_i32 = arith.constant 0 : i32
    %c0_i32_0 = arith.constant 0 : i32
    %c0_i32_1 = arith.constant 0 : i32
    return %c0_i32, %c0_i32_0 : i32, i32
  }
  func.func @transform_7(%arg0: i32) -> (i32, i32, i32) {
    %c0_i32 = arith.constant 0 : i32
    %c0_i32_0 = arith.constant 0 : i32
    %c0_i32_1 = arith.constant 0 : i32
    return %arg0, %c0_i32, %c0_i32_0 : i32, i32, i32
  }
}

</mosaic_0001>

<llo_original>
// kernel: tpu_custom_call.1
$region0: #{tpu_custom_call.1}
  #allocation0 [shape = 'u32[]', space=smem, size = 0x4, offset = 0x4, fixed_abs, tag = 'smem constant byte address 0x4 - core index']
  #allocation1 [shape = 'u32[144,128]{1,0:T(1,128)}', space=vmem, size = 0x12000, scoped, tag = 'internal scratch']
  %s0 = inlined_call_operand.hbm [shape: f32[1,8,16], index: 0, kind: input, shape index: {}]
  %s1 = inlined_call_operand.hbm [shape: bf16[16,128], index: 1, kind: input, shape index: {}]
  %s2 = inlined_call_operand.vmem [shape: f32[1,128], index: 2, kind: input, shape index: {}]
  %s3 = inlined_call_operand.vmem [shape: f32[1,128], index: 3, kind: input, shape index: {}]
  %s4 = inlined_call_operand.hbm [shape: bf16[32,128], index: 4, kind: input, shape index: {}]
  %s5 = inlined_call_operand.vmem [shape: f32[1,128], index: 5, kind: input, shape index: {}]
  %s6 = inlined_call_operand.vmem [shape: f32[1,128], index: 6, kind: input, shape index: {}]
  %s7 = inlined_call_operand.hbm [shape: f32[1,8,128], index: 7, kind: output, shape index: {}]
  %s8 = sld [smem:[#allocation0]]
  $region50: #{tpu_custom_call.1} parent=0
    _
  %s10 = ssub.s32 1, %s8
  %s11 = scalar_select 0, %s10, %s8
  $region1: #{tpu_custom_call.1} parent=0
    #allocation2 [shape = 'u8[4096]{0}', space=vmem, size = 0x1000, scoped, tag = 'input window, operand 0, single buffered']
    #allocation3 [shape = 's32[1]{0}', space=sflag, size = 0x4, scoped, tag = 'scoped memory for tpu_custom_call.1']
    #allocation4 [shape = 's32[1]{0}', space=sflag, size = 0x4, scoped, tag = 'scoped memory for tpu_custom_call.1']
    #allocation5 [shape = 'u8[4096]{0}', space=vmem, size = 0x1000, scoped, tag = 'input window, operand 1, single buffered']
    #allocation6 [shape = 's32[1]{0}', space=sflag, size = 0x4, scoped, tag = 'scoped memory for tpu_custom_call.1']
    #allocation7 [shape = 'u8[8192]{0}', space=vmem, size = 0x2000, scoped, tag = 'input window, operand 4, single buffered']
    #allocation8 [shape = 'u8[4096]{0}', space=vmem, size = 0x1000, scoped, tag = 'output window, operand 0, single buffered']
    %12 = vsyncpa [#allocation3], 0
    %13 = vsyncpa [#allocation6], 0
    %14 = vsyncpa [#allocation4], 0
    // Predicated region
    $region2: #{tpu_custom_call.1} parent=1 // pred_check
      _
    $region3: #{tpu_custom_call.1} parent=1 // pred_check_branch
      %16 = sbr.rel (0) target = $region5
    $region4: #{tpu_custom_call.1} parent=1 // pred_region
      %s18 = ssub.s32 128, 128
      %19 = vsyncadd [#allocation3], %s18
      %s21 = sshll.u32 [#allocation2], 4
      %s22 = int_to_ptr.vmem [resolvable:$true] %s21
      %24 = dma.hbm_to_vmem [thread:$0]  %s0, 128, %s22, [#allocation3]
    $region5: #{tpu_custom_call.1} parent=1 // pred_fallthru
      _
    // Predicated region
    $region6: #{tpu_custom_call.1} parent=1 // pred_check
      _
    $region7: #{tpu_custom_call.1} parent=1 // pred_check_branch
      %26 = sbr.rel (0) target = $region9
    $region8: #{tpu_custom_call.1} parent=1 // pred_region
      %s28 = ssub.s32 128, 128
      %29 = vsyncadd [#allocation6], %s28
      %s30 = sshll.u32 [#allocation5], 4
      %s31 = int_to_ptr.vmem [resolvable:$true] %s30
      %36 = dma.hbm_to_vmem [thread:$0]  %s1, 128, %s31, [#allocation6], 64, 64, 4
    $region9: #{tpu_custom_call.1} parent=1 // pred_fallthru
      _
    // Predicated region
    $region10: #{tpu_custom_call.1} parent=1 // pred_check
      _
    $region11: #{tpu_custom_call.1} parent=1 // pred_check_branch
      %38 = sbr.rel (0) target = $region13
    $region12: #{tpu_custom_call.1} parent=1 // pred_region
      _
    $region13: #{tpu_custom_call.1} parent=1 // pred_fallthru
      _
    // Predicated region
    $region14: #{tpu_custom_call.1} parent=1 // pred_check
      _
    $region15: #{tpu_custom_call.1} parent=1 // pred_check_branch
      %40 = sbr.rel (0) target = $region17
    $region16: #{tpu_custom_call.1} parent=1 // pred_region
      _
    $region17: #{tpu_custom_call.1} parent=1 // pred_fallthru
      _
    // Predicated region
    $region18: #{tpu_custom_call.1} parent=1 // pred_check
      _
    $region19: #{tpu_custom_call.1} parent=1 // pred_check_branch
      %42 = sbr.rel (0) target = $region21
    $region20: #{tpu_custom_call.1} parent=1 // pred_region
      %s44 = ssub.s32 256, 256
      %45 = vsyncadd [#allocation6], %s44
      %s46 = sshll.u32 [#allocation7], 4
      %s47 = int_to_ptr.vmem [resolvable:$true] %s46
      %52 = dma.hbm_to_vmem [thread:$0]  %s4, 256, %s47, [#allocation6], 64, 64, 4
    $region21: #{tpu_custom_call.1} parent=1 // pred_fallthru
      _
    // Predicated region
    $region22: #{tpu_custom_call.1} parent=1 // pred_check
      _
    $region23: #{tpu_custom_call.1} parent=1 // pred_check_branch
      %54 = sbr.rel (0) target = $region25
    $region24: #{tpu_custom_call.1} parent=1 // pred_region
      _
    $region25: #{tpu_custom_call.1} parent=1 // pred_fallthru
      _
    // Predicated region
    $region26: #{tpu_custom_call.1} parent=1 // pred_check
      _
    $region27: #{tpu_custom_call.1} parent=1 // pred_check_branch
      %56 = sbr.rel (0) target = $region29
    $region28: #{tpu_custom_call.1} parent=1 // pred_region
      _
    $region29: #{tpu_custom_call.1} parent=1 // pred_fallthru
      _
    // Predicated region
    $region30: #{tpu_custom_call.1} parent=1 // pred_check
      _
    $region31: #{tpu_custom_call.1} parent=1 // pred_check_branch
      %58 = sbr.rel (0) target = $region33
    $region32: #{tpu_custom_call.1} parent=1 // pred_region
      %59 = dma.done [#allocation3], 128
    $region33: #{tpu_custom_call.1} parent=1 // pred_fallthru
      _
    // Predicated region
    $region34: #{tpu_custom_call.1} parent=1 // pred_check
      _
    $region35: #{tpu_custom_call.1} parent=1 // pred_check_branch
      %61 = sbr.rel (0) target = $region37
    $region36: #{tpu_custom_call.1} parent=1 // pred_region
      %62 = dma.done [#allocation6], 128
    $region37: #{tpu_custom_call.1} parent=1 // pred_fallthru
      _
    // Predicated region
    $region38: #{tpu_custom_call.1} parent=1 // pred_check
      _
    $region39: #{tpu_custom_call.1} parent=1 // pred_check_branch
      %64 = sbr.rel (0) target = $region41
    $region40: #{tpu_custom_call.1} parent=1 // pred_region
      %65 = dma.done [#allocation6], 256
    $region41: #{tpu_custom_call.1} parent=1 // pred_fallthru
      _
    %v67 = vld [vmem:[#allocation2] sm:$0xff]
    %v68 = vld [vmem:[#allocation5] sm:$0xf]
    %v69 = vld [vmem:[#allocation5 + $0x4] sm:$0xf]
    %v70 = vld [vmem:[%s2] sm:$0x1]
    %v71 = vld [vmem:[%s3] sm:$0x1]
    %v72 = vpack.c.bf16 %v67, %v67
    %v75 = vunpack.c.l.b16 %v68
    %v76 = vunpack.c.l.b16 %v69
    %v77 = vpack.c.b16 %v76, %v75
    %vm79 = vcmask 130048
    %v81 = vsel %vm79, %v72, 0
    %83 = vmatprep.subr.bf16.mxu0 0
    %84 = vmatpush1.bf16.msra.mxu0 %v77
    %85 = vmatprep.subr.bf16.mxu0 0
    %86 = vmatpush1.bf16.msra.mxu0 0
    %87 = vmatprep.subr.bf16.mxu0 0
    %88 = vmatpush1.bf16.msra.mxu0 0
    %89 = vmatprep.subr.bf16.mxu0 0
    %90 = vmatpush1.bf16.msra.mxu0 0
    %91 = vmatprep.subr.bf16.mxu0 0
    %92 = vmatpush1.bf16.msra.mxu0 0
    %93 = vmatprep.subr.bf16.mxu0 0
    %94 = vmatpush1.bf16.msra.mxu0 0
    %95 = vmatprep.subr.bf16.mxu0 0
    %96 = vmatpush1.bf16.msra.mxu0 0
    %97 = vmatprep.subr.bf16.mxu0 0
    %98 = vmatpush1.bf16.msra.mxu0 0
    %99 = vmatprep.subr.bf16.mxu0 0
    %100 = vmatpush1.bf16.msra.mxu0 0
    %101 = vmatprep.subr.bf16.mxu0 0
    %102 = vmatpush1.bf16.msra.mxu0 0
    %103 = vmatprep.subr.bf16.mxu0 0
    %104 = vmatpush1.bf16.msra.mxu0 0
    %105 = vmatprep.subr.bf16.mxu0 0
    %106 = vmatpush1.bf16.msra.mxu0 0
    %107 = vmatprep.subr.bf16.mxu0 0
    %108 = vmatpush1.bf16.msra.mxu0 0
    %109 = vmatprep.subr.bf16.mxu0 0
    %110 = vmatpush1.bf16.msra.mxu0 0
    %111 = vmatprep.subr.bf16.mxu0 0
    %112 = vmatpush1.bf16.msra.mxu0 0
    %113 = vmatprep.subr.bf16.mxu0 0
    %114 = vmatpush1.bf16.msra.mxu0 0
    %115 = vmatprep.mubr.bf16.mxu0 0
    %116 = vmatmul.mubr.bf16.gmra.mrb[0].mxu0 %v81
    %v117 = vpop.f32.mrb[0].mxu0
    %v118 = vadd.f32 0.0, %v117
    %v119 = vpop.f32.mrb[0].mxu0
    %v120 = vpop.f32.mrb[0].mxu0
    %v121 = vpop.f32.mrb[0].mxu0
    %122 = vdwg.mxu0
    %v123 = vrot.slane %v118, 4
    %v124 = vadd.f32 %v118, %v123
    %v125 = vrot.slane %v124, 2
    %v126 = vadd.f32 %v124, %v125
    %v127 = vrot.slane %v126, 1
    %v128 = vadd.f32 %v126, %v127
    %v129 = vmul.f32 %v128, 0.125
    %v130 = vsub.f32 %v118, %v129
    %v131 = vmul.f32 %v130, %v130
    %v132 = vrot.slane %v131, 4
    %v133 = vadd.f32 %v131, %v132
    %v134 = vrot.slane %v133, 2
    %v135 = vadd.f32 %v133, %v134
    %v136 = vrot.slane %v135, 1
    %v137 = vadd.f32 %v135, %v136
    %v138 = vmul.f32 %v137, 0.125
    %v139 = vadd.f32 %v138, 1e-05
    %v140 = vrsqrt.pop %v139
    %v141 = vmul.f32 %v70, %v140
    %v143 = vlaneseq
    %v144 = vshrl.u32 %v143, 7
    %v145 = vsub.s32 0, %v144
    %v146 = vrot.slane %v141, %v145
    %v148 = vmul.f32 %v130, %v146
    %v150 = vlaneseq
    %v151 = vshrl.u32 %v150, 7
    %v152 = vsub.s32 0, %v151
    %v153 = vrot.slane %v71, %v152
    %v155 = vadd.f32 %v148, %v153
    %v156 = vmax.f32 %v155, 0.0
    %v157 = vld [vmem:[#allocation7] sm:$0xf]
    %v158 = vld [vmem:[#allocation7 + $0x4] sm:$0xf]
    %v159 = vld [vmem:[#allocation7 + $0x8] sm:$0xf]
    %v160 = vld [vmem:[#allocation7 + $0xc] sm:$0xf]
    %v161 = vld [vmem:[%s5] sm:$0x1]
    %v162 = vld [vmem:[%s6] sm:$0x1]
    %v163 = vpack.c.bf16 %v156, %v156
    %v168 = vunpack.c.l.b16 %v157
    %v169 = vunpack.c.l.b16 %v158
    %v170 = vunpack.c.l.b16 %v159
    %v171 = vunpack.c.l.b16 %v160
    %v172 = vpack.c.b16 %v169, %v168
    %v173 = vpack.c.b16 %v171, %v170
    %vm176 = vcmask 261120
    %v178 = vsel %vm176, %v163, 0
    %180 = vmatprep.subr.bf16.mxu0 0
    %181 = vmatpush1.bf16.msra.mxu0 %v172
    %182 = vmatprep.subr.bf16.mxu0 0
    %183 = vmatpush1.bf16.msra.mxu0 %v173
    %184 = vmatprep.subr.bf16.mxu0 0
    %185 = vmatpush1.bf16.msra.mxu0 0
    %186 = vmatprep.subr.bf16.mxu0 0
    %187 = vmatpush1.bf16.msra.mxu0 0
    %188 = vmatprep.subr.bf16.mxu0 0
    %189 = vmatpush1.bf16.msra.mxu0 0
    %190 = vmatprep.subr.bf16.mxu0 0
    %191 = vmatpush1.bf16.msra.mxu0 0
    %192 = vmatprep.subr.bf16.mxu0 0
    %193 = vmatpush1.bf16.msra.mxu0 0
    %194 = vmatprep.subr.bf16.mxu0 0
    %195 = vmatpush1.bf16.msra.mxu0 0
    %196 = vmatprep.subr.bf16.mxu0 0
    %197 = vmatpush1.bf16.msra.mxu0 0
    %198 = vmatprep.subr.bf16.mxu0 0
    %199 = vmatpush1.bf16.msra.mxu0 0
    %200 = vmatprep.subr.bf16.mxu0 0
    %201 = vmatpush1.bf16.msra.mxu0 0
    %202 = vmatprep.subr.bf16.mxu0 0
    %203 = vmatpush1.bf16.msra.mxu0 0
    %204 = vmatprep.subr.bf16.mxu0 0
    %205 = vmatpush1.bf16.msra.mxu0 0
    %206 = vmatprep.subr.bf16.mxu0 0
    %207 = vmatpush1.bf16.msra.mxu0 0
    %208 = vmatprep.subr.bf16.mxu0 0
    %209 = vmatpush1.bf16.msra.mxu0 0
    %210 = vmatprep.subr.bf16.mxu0 0
    %211 = vmatpush1.bf16.msra.mxu0 0
    %212 = vmatprep.mubr.bf16.mxu0 0
    %213 = vmatmul.mubr.bf16.gmra.mrb[0].mxu0 %v178
    %v214 = vpop.f32.mrb[0].mxu0
    %v215 = vadd.f32 0.0, %v214
    %v216 = vpop.f32.mrb[0].mxu0
    %v217 = vpop.f32.mrb[0].mxu0
    %v218 = vpop.f32.mrb[0].mxu0
    %219 = vdwg.mxu0
    %v220 = vrot.slane %v215, 4
    %v221 = vadd.f32 %v215, %v220
    %v222 = vrot.slane %v221, 2
    %v223 = vadd.f32 %v221, %v222
    %v224 = vrot.slane %v223, 1
    %v225 = vadd.f32 %v223, %v224
    %v226 = vmul.f32 %v225, 0.125
    %v227 = vsub.f32 %v215, %v226
    %v228 = vmul.f32 %v227, %v227
    %v229 = vrot.slane %v228, 4
    %v230 = vadd.f32 %v228, %v229
    %v231 = vrot.slane %v230, 2
    %v232 = vadd.f32 %v230, %v231
    %v233 = vrot.slane %v232, 1
    %v234 = vadd.f32 %v232, %v233
    %v235 = vmul.f32 %v234, 0.125
    %v236 = vadd.f32 %v235, 1e-05
    %v237 = vrsqrt.pop %v236
    %v238 = vmul.f32 %v161, %v237
    %v240 = vlaneseq
    %v241 = vshrl.u32 %v240, 7
    %v242 = vsub.s32 0, %v241
    %v243 = vrot.slane %v238, %v242
    %v245 = vmul.f32 %v227, %v243
    %v247 = vlaneseq
    %v248 = vshrl.u32 %v247, 7
    %v249 = vsub.s32 0, %v248
    %v250 = vrot.slane %v162, %v249
    %v252 = vadd.f32 %v245, %v250
    %253 = vst [vmem:[#allocation8] sm:$0xff] %v252
    // Predicated region
    $region42: #{tpu_custom_call.1} parent=1 // pred_check
      _
    $region43: #{tpu_custom_call.1} parent=1 // pred_check_branch
      %255 = sbr.rel (0) target = $region45
    $region44: #{tpu_custom_call.1} parent=1 // pred_region
      %s257 = ssub.s32 128, 128
      %258 = vsyncadd [#allocation4], %s257
      %s260 = sshll.u32 [#allocation8], 4
      %s261 = int_to_ptr.vmem [resolvable:$true] %s260
      %263 = dma.vmem_to_hbm [thread:$0]  %s261, 128, %s7, [#allocation4]
    $region45: #{tpu_custom_call.1} parent=1 // pred_fallthru
      _
    // Predicated region
    $region46: #{tpu_custom_call.1} parent=1 // pred_check
      _
    $region47: #{tpu_custom_call.1} parent=1 // pred_check_branch
      %265 = sbr.rel (0) target = $region49
    $region48: #{tpu_custom_call.1} parent=1 // pred_region
      %266 = dma.done [#allocation4], 128
    $region49: #{tpu_custom_call.1} parent=1 // pred_fallthru
      _
    %267 = vsyncpa [#allocation3], 1
    %268 = vsyncpa [#allocation6], 1
    %269 = vsyncpa [#allocation4], 1

</llo_original>
